<compile_context>
chip_gen: v7x
topology: tpu7x:2x2x1
jax: 0.10.0
libtpu: 0.0.40
codegen_flags: <defaults>
</compile_context>

<pallas_src>
import functools

import jax
import jax.numpy as jnp
from jax.experimental import pallas as pl
from jax.experimental.pallas import tpu as pltpu

_LANE = 128
# Wide, lane-dense last dims give long contiguous DMA bursts and unmasked vst.
_LANE_WIDTH_CANDIDATES = (32768, 16384, 8192, 4096, 2048, 1024, 512, 256, 128)


def _tanh_kernel(x_ref, o_ref):
    # jnp.tanh lowers to the TPU transcendental unit (EUP), which rides its own
    # VLIW slot, so the kernel stays purely HBM-bandwidth bound.
    # TODO(synk): on v7x, confirm in the bundle dump that tanh is a single EUP
    # op (not a VALU polynomial); if not, re-express via exp + pl.reciprocal.
    o_ref[...] = jnp.tanh(x_ref[...])


def _sublane_multiple(dtype) -> int:
    itemsize = jnp.dtype(dtype).itemsize
    if itemsize >= 4:
        return 8
    if itemsize == 2:
        return 16
    return 32


def _cdiv(a: int, b: int) -> int:
    return -(-a // b)


def _round_up(a: int, m: int) -> int:
    return _cdiv(a, m) * m


@functools.lru_cache(maxsize=1)
def _chip_config():
    """Returns (block_bytes, vmem_limit_bytes, num_tensorcores).

    Defaults are safe on every generation: 8 MiB blocks double-buffered for
    input + output = 32 MiB, under v7x's 64 MiB physical VMEM.
    """
    block_bytes = 8 * 1024 * 1024
    vmem_limit = 40 * 1024 * 1024
    num_cores = 1
    try:
        info = pltpu.get_tpu_info()
        for attr in ("num_tensorcores", "tensorcore_count", "num_cores", "core_count"):
            val = getattr(info, attr, None)
            if isinstance(val, int) and val > 0:
                num_cores = val
                break
        vmem_cap = getattr(info, "vmem_capacity_bytes", None)
        if isinstance(vmem_cap, int) and vmem_cap > 0:
            if vmem_cap >= 96 * 1024 * 1024:
                # v5e / v6e: 128 MiB VMEM, single TensorCore. Plenty of headroom.
                vmem_limit = 64 * 1024 * 1024
            else:
                # v7x-like: 64 MiB VMEM, 2 TensorCores. Never exceed 8 MiB blocks
                # here (16 MiB x 2 bufs x in+out would consume all of VMEM).
                vmem_limit = 40 * 1024 * 1024
                if num_cores == 1:
                    num_cores = 2
    except Exception:
        pass
    return block_bytes, vmem_limit, num_cores


def _choose_width(n_work: int, sub: int) -> int:
    """Largest lane-dense width C (multiple of 128) dividing n_work with >= sub rows."""
    for cand in _LANE_WIDTH_CANDIDATES:
        if n_work % cand == 0 and n_work // cand >= sub:
            return cand
    # Small arrays (< sub * 128 elements): narrowest divisor maximizes sublane
    # usage; a single full-extent block is used in that case anyway.
    for cand in reversed(_LANE_WIDTH_CANDIDATES):
        if n_work % cand == 0:
            return cand
    return 0


def _choose_row_block(rows: int, c: int, itemsize: int, sub: int,
                      block_bytes: int, num_cores: int) -> int:
    budget_rows = max(sub, (block_bytes // (c * itemsize)) // sub * sub)
    if rows <= budget_rows:
        if num_cores >= 2 and rows >= 2 * sub:
            # Split so every TensorCore gets a block (v7x megacore).
            return min(rows, _round_up(_cdiv(rows, num_cores), sub))
        # Single-TC chip (or tiny array): one full-extent block, no extra steps.
        return rows
    br = budget_rows
    if num_cores >= 2:
        nblk = _cdiv(rows, br)
        if nblk % num_cores != 0:
            # Round the step count up to a multiple of the core count so both
            # TensorCores get equal work (avoid a 2:1 load-imbalance tail).
            nblk = _round_up(nblk, num_cores)
            br = max(sub, _round_up(_cdiv(rows, nblk), sub))
    return br


def _tanh_2d(x2: jax.Array, br: int, vmem_limit: int, semantics) -> jax.Array:
    rows, c = x2.shape
    itemsize = jnp.dtype(x2.dtype).itemsize
    nblk = _cdiv(rows, br)
    return pl.pallas_call(
        _tanh_kernel,
        out_shape=jax.ShapeDtypeStruct((rows, c), x2.dtype),
        grid_spec=pltpu.PrefetchScalarGridSpec(
            num_scalar_prefetch=0,
            grid=(nblk,),
            in_specs=[pl.BlockSpec((br, c), lambda i: (i, 0))],
            out_specs=pl.BlockSpec((br, c), lambda i: (i, 0)),
        ),
        compiler_params=pltpu.CompilerParams(
            dimension_semantics=semantics,
            vmem_limit_bytes=vmem_limit,
        ),
        cost_estimate=pl.CostEstimate(
            flops=0,
            transcendentals=rows * c,
            bytes_accessed=2 * rows * c * itemsize,
        ),
    )(x2)


def pallas_tanh(x: jax.Array) -> jax.Array:
    """Elementwise tanh via a Pallas TPU kernel. Works for any shape / float dtype."""
    orig_shape = x.shape
    n = int(x.size)
    if n == 0:
        return x

    dtype = x.dtype
    itemsize = jnp.dtype(dtype).itemsize
    sub = _sublane_multiple(dtype)
    block_bytes, vmem_limit, num_cores = _chip_config()

    flat = x.reshape(-1)

    # Kernel handles the first multiple-of-128 chunk; the < 128-element
    # remainder (rare, tiny) goes through plain jnp.tanh. This avoids a
    # full-array pad + slice, which would double HBM traffic.
    n_main = (n // _LANE) * _LANE
    if n_main == 0:
        # Fewer than 128 elements: a kernel launch is pure overhead.
        return jnp.tanh(x)

    c = _choose_width(n_main, sub)
    rows = n_main // c
    br = _choose_row_block(rows, c, itemsize, sub, block_bytes, num_cores)
    nblk = _cdiv(rows, br)

    core_parallel = getattr(pltpu, "CORE_PARALLEL", None)
    if (num_cores >= 2 and core_parallel is not None
            and nblk >= num_cores and nblk % num_cores == 0):
        semantics = (core_parallel,)
    else:
        semantics = ("parallel",)

    main = flat if n_main == n else flat[:n_main]
    out_main = _tanh_2d(main.reshape(rows, c), br, vmem_limit, semantics).reshape(-1)

    if n_main == n:
        return out_main.reshape(orig_shape)
    tail = jnp.tanh(flat[n_main:])
    return jnp.concatenate([out_main, tail]).reshape(orig_shape)


if __name__ == "__main__":
    key = jax.random.PRNGKey(0)
    # Small 4-D input consistent with a typical activation tensor (NCHW-like).
    x = jax.random.normal(key, (2, 4, 16, 16), dtype=jnp.float32)

    y = jax.block_until_ready(pallas_tanh(x))
    y_ref = jnp.tanh(x)
    assert y.shape == x.shape and y.dtype == x.dtype
    assert jnp.allclose(y, y_ref, atol=1e-5, rtol=1e-5)

    # Non-multiple-of-128 size with a >=128-element main chunk (main + tail path).
    x_odd = jax.random.normal(jax.random.PRNGKey(1), (7, 37), dtype=jnp.float32)
    y_odd = jax.block_until_ready(pallas_tanh(x_odd))
    assert y_odd.shape == x_odd.shape and y_odd.dtype == x_odd.dtype
    assert jnp.allclose(y_odd, jnp.tanh(x_odd), atol=1e-5, rtol=1e-5)

    # Tiny (<128 elements) path.
    x_tiny = jax.random.normal(jax.random.PRNGKey(2), (3, 5, 7), dtype=jnp.float32)
    y_tiny = jax.block_until_ready(pallas_tanh(x_tiny))
    assert jnp.allclose(y_tiny, jnp.tanh(x_tiny), atol=1e-5, rtol=1e-5)

    # A larger shape to exercise the multi-block / wide-lane path.
    x_big = jax.random.normal(jax.random.PRNGKey(3), (64, 4096), dtype=jnp.float32)
    y_big = jax.block_until_ready(pallas_tanh(x_big))
    assert jnp.allclose(y_big, jnp.tanh(x_big), atol=1e-5, rtol=1e-5)

    print("KERNEL_OK")
</pallas_src>

<mosaic_0001>
module attributes {stable_mosaic.version = 11 : i64} {
  func.func @_tanh_kernel(%arg0: i32, %arg1: memref<8x256xf32, #tpu.memory_space<vmem>>, %arg2: memref<8x256xf32, #tpu.memory_space<vmem>>) attributes {dimension_semantics = [#tpu.dimension_semantics<parallel>], iteration_bounds = array<i64: 1>, scalar_prefetch = 0 : i64, scratch_operands = 0 : i64, tpu.core_type = #tpu.core_type<tc>, window_params = [{transform_indices = @transform_0, window_bounds = array<i64: 8, 256>}, {transform_indices = @transform_1, window_bounds = array<i64: 8, 256>}]} {
    %c0 = arith.constant 0 : index
    %c0_0 = arith.constant 0 : index
    %0 = vector.load %arg1[%c0, %c0_0] : memref<8x256xf32, #tpu.memory_space<vmem>>, vector<8x256xf32>
    %1 = math.tanh %0 : vector<8x256xf32>
    %c0_1 = arith.constant 0 : index
    %c0_2 = arith.constant 0 : index
    %2 = vector.load %arg2[%c0_1, %c0_2] : memref<8x256xf32, #tpu.memory_space<vmem>>, vector<8x256xf32>
    tpu.vector_store %arg2[%c0_1, %c0_2], %1 {strides = array<i32>} : memref<8x256xf32, #tpu.memory_space<vmem>>, vector<8x256xf32>,
    return
  }
  func.func @transform_0(%arg0: i32) -> (i32, i32) {
    %c0_i32 = arith.constant 0 : i32
    %c0_i32_0 = arith.constant 0 : i32
    return %arg0, %c0_i32 : i32, i32
  }
  func.func @transform_1(%arg0: i32) -> (i32, i32) {
    %c0_i32 = arith.constant 0 : i32
    %c0_i32_0 = arith.constant 0 : i32
    return %arg0, %c0_i32 : i32, i32
  }
}

</mosaic_0001>

<llo_original>
// kernel: tpu_custom_call.1
$region0: #{tpu_custom_call.1}
  #allocation0 [shape = 'u32[]', space=smem, size = 0x4, offset = 0x4, fixed_abs, tag = 'smem constant byte address 0x4 - core index']
  #allocation1 [shape = 'u32[144,128]{1,0:T(1,128)}', space=vmem, size = 0x12000, scoped, tag = 'internal scratch']
  %s0 = inlined_call_operand.hbm [shape: f32[8,256], index: 0, kind: input, shape index: {}]
  %s1 = inlined_call_operand.hbm [shape: f32[8,256], index: 1, kind: output, shape index: {}]
  %s2 = sld [smem:[#allocation0]]
  $region18: #{tpu_custom_call.1} parent=0
    _
  %s4 = ssub.s32 1, %s2
  %s5 = scalar_select 0, %s4, %s2
  $region1: #{tpu_custom_call.1} parent=0
    #allocation2 [shape = 'u8[8192]{0}', space=vmem, size = 0x2000, scoped, tag = 'input window, operand 0, single buffered']
    #allocation3 [shape = 's32[1]{0}', space=sflag, size = 0x4, scoped, tag = 'scoped memory for tpu_custom_call.1']
    #allocation4 [shape = 's32[1]{0}', space=sflag, size = 0x4, scoped, tag = 'scoped memory for tpu_custom_call.1']
    #allocation5 [shape = 'u8[8192]{0}', space=vmem, size = 0x2000, scoped, tag = 'output window, operand 0, single buffered']
    %6 = vsyncpa [#allocation3], 0
    %7 = vsyncpa [#allocation4], 0
    // Predicated region
    $region2: #{tpu_custom_call.1} parent=1 // pred_check
      _
    $region3: #{tpu_custom_call.1} parent=1 // pred_check_branch
      %9 = sbr.rel (0) target = $region5
    $region4: #{tpu_custom_call.1} parent=1 // pred_region
      %s11 = ssub.s32 256, 256
      %12 = vsyncadd [#allocation3], %s11
      %s14 = sshll.u32 [#allocation2], 4
      %s15 = int_to_ptr.vmem [resolvable:$true] %s14
      %17 = dma.hbm_to_vmem [thread:$0]  %s0, 256, %s15, [#allocation3]
    $region5: #{tpu_custom_call.1} parent=1 // pred_fallthru
      _
    // Predicated region
    $region6: #{tpu_custom_call.1} parent=1 // pred_check
      _
    $region7: #{tpu_custom_call.1} parent=1 // pred_check_branch
      %19 = sbr.rel (0) target = $region9
    $region8: #{tpu_custom_call.1} parent=1 // pred_region
      %20 = dma.done [#allocation3], 256
    $region9: #{tpu_custom_call.1} parent=1 // pred_fallthru
      _
    %v21 = vld [vmem:[#allocation2] sm:$0xff]
    %v22 = vld [vmem:[#allocation2 + $0x8] sm:$0xff]
    %v23 = vtanh.pop %v21
    %v24 = vtanh.pop %v22
    %25 = vst [vmem:[#allocation5] sm:$0xff] %v23
    %26 = vst [vmem:[#allocation5 + $0x8] sm:$0xff] %v24
    // Predicated region
    $region10: #{tpu_custom_call.1} parent=1 // pred_check
      _
    $region11: #{tpu_custom_call.1} parent=1 // pred_check_branch
      %28 = sbr.rel (0) target = $region13
    $region12: #{tpu_custom_call.1} parent=1 // pred_region
      %s30 = ssub.s32 256, 256
      %31 = vsyncadd [#allocation4], %s30
      %s33 = sshll.u32 [#allocation5], 4
      %s34 = int_to_ptr.vmem [resolvable:$true] %s33
      %36 = dma.vmem_to_hbm [thread:$0]  %s34, 256, %s1, [#allocation4]
    $region13: #{tpu_custom_call.1} parent=1 // pred_fallthru
      _
    // Predicated region
    $region14: #{tpu_custom_call.1} parent=1 // pred_check
      _
    $region15: #{tpu_custom_call.1} parent=1 // pred_check_branch
      %38 = sbr.rel (0) target = $region17
    $region16: #{tpu_custom_call.1} parent=1 // pred_region
      %39 = dma.done [#allocation4], 256
    $region17: #{tpu_custom_call.1} parent=1 // pred_fallthru
      _
    %40 = vsyncpa [#allocation3], 1
    %41 = vsyncpa [#allocation4], 1

</llo_original>
